<compile_context>
chip_gen: v5e
topology: v5e:2x2
jax: 0.10.0
libtpu: 0.0.40
codegen_flags: <defaults>
</compile_context>

<pallas_src>
import jax
import jax.numpy as jnp
from jax.experimental import pallas as pl
from jax.experimental.pallas import tpu as pltpu


def phage_rnn_kernel(x_ref, h_ref, wx_ref, wh_ref, b_ref, out_ref, hid_ref):
    """Fused single-step RNN cell: two MXU pushes, one fused (B, H+O) tile.

    x_ref  : (B, I)      input at this step
    h_ref  : (B, H)      previous hidden state
    wx_ref : (I, H+O)    input rows of fused [i2h | i2o] weight (pre-transposed)
    wh_ref : (H, H+O)    hidden rows of fused [i2h | i2o] weight
    b_ref  : (1, H+O)    fused bias row
    out_ref: (B, O)      log-softmax output
    hid_ref: (B, H)      new hidden state
    """
    H = hid_ref.shape[1]

    # fused = [ new_hidden | logits ]  computed in one lane-dense tile.
    fused = (
        jnp.dot(x_ref[...], wx_ref[...], preferred_element_type=jnp.float32)
        + jnp.dot(h_ref[...], wh_ref[...], preferred_element_type=jnp.float32)
        + b_ref[...]
    )

    # New hidden state: first H lanes.
    hid_ref[...] = fused[:, :H].astype(hid_ref.dtype)

    # LogSoftmax over the last O lanes (numerically stable max-shift).
    logits = fused[:, H:]
    m = jnp.max(logits, axis=1, keepdims=True)
    shifted = logits - m
    lse = jnp.log(jnp.sum(jnp.exp(shifted), axis=1, keepdims=True))
    out_ref[...] = (shifted - lse).astype(out_ref.dtype)


def prepare_params(w_i2h, b_i2h, w_i2o, b_i2o, input_size):
    """One-time weight prep (hoisted out of the per-step call path).

    PyTorch layout is (out_features, in_features); we transpose to (in, out),
    fuse the two projections along the output axis, and split by input operand
    so the kernel never has to concatenate activations.
    """
    wh_t = w_i2h.T                                          # (I+H, H)
    wo_t = w_i2o.T                                          # (I+H, O)
    w_fused = jnp.concatenate([wh_t, wo_t], axis=1)         # (I+H, H+O)
    w_x = w_fused[:input_size]                              # (I,   H+O)
    w_h = w_fused[input_size:]                              # (H,   H+O)
    b_fused = jnp.concatenate([b_i2h, b_i2o]).reshape(1, -1)  # (1, H+O)
    return w_x, w_h, b_fused


def phage_rnn_forward(x, h, w_x, w_h, b_fused):
    """Single-step forward. Returns (log_softmax_output, new_hidden)."""
    B = x.shape[0]
    H = h.shape[1]
    O = b_fused.shape[1] - H

    out, new_hidden = pl.pallas_call(
        phage_rnn_kernel,
        out_shape=(
            jax.ShapeDtypeStruct((B, O), jnp.float32),
            jax.ShapeDtypeStruct((B, H), jnp.float32),
        ),
        # Everything comfortably fits in VMEM at these sizes: full-array blocks
        # (block_shape == array shape satisfies the (8,128) tiling rule).
        in_specs=[
            pl.BlockSpec(memory_space=pltpu.VMEM),  # x
            pl.BlockSpec(memory_space=pltpu.VMEM),  # h
            pl.BlockSpec(memory_space=pltpu.VMEM),  # w_x
            pl.BlockSpec(memory_space=pltpu.VMEM),  # w_h
            pl.BlockSpec(memory_space=pltpu.VMEM),  # b_fused
        ],
        out_specs=(
            pl.BlockSpec(memory_space=pltpu.VMEM),
            pl.BlockSpec(memory_space=pltpu.VMEM),
        ),
        # Explicit scoped-VMEM limit: safe on all generations, and avoids the
        # v5e 16 MiB default rejecting larger full-array blocks if shapes grow.
        compiler_params=pltpu.CompilerParams(
            vmem_limit_bytes=32 * 1024 * 1024,
        ),
    )(x, h, w_x, w_h, b_fused)
    return out, new_hidden


def _torch_like_linear_init(key, out_features, in_features):
    """Deterministic init mimicking nn.Linear default: U(-k, k), k=1/sqrt(fan_in)."""
    k = 1.0 / jnp.sqrt(jnp.float32(in_features))
    kw, kb = jax.random.split(key)
    w = jax.random.uniform(kw, (out_features, in_features),
                           jnp.float32, minval=-k, maxval=k)
    b = jax.random.uniform(kb, (out_features,),
                           jnp.float32, minval=-k, maxval=k)
    return w, b


if __name__ == "__main__":
    # Small shapes consistent with the module's forward.
    batch = 2
    input_size = 8
    hidden_size = 32
    output_size = 8

    key = jax.random.PRNGKey(0)
    k_x, k_h, k_i2h, k_i2o = jax.random.split(key, 4)

    x = jax.random.normal(k_x, (batch, input_size), jnp.float32)
    # init_hidden() gives zeros; broadcast over the batch here.
    h0 = jnp.zeros((batch, hidden_size), jnp.float32)

    w_i2h, b_i2h = _torch_like_linear_init(k_i2h, hidden_size,
                                           input_size + hidden_size)
    w_i2o, b_i2o = _torch_like_linear_init(k_i2o, output_size,
                                           input_size + hidden_size)

    # One-time fused/transposed weight prep (outside the per-step path).
    w_x, w_h, b_fused = prepare_params(w_i2h, b_i2h, w_i2o, b_i2o, input_size)
    w_x, w_h, b_fused = jax.block_until_ready((w_x, w_h, b_fused))

    out, new_hidden = phage_rnn_forward(x, h0, w_x, w_h, b_fused)
    jax.block_until_ready((out, new_hidden))

    # Pure-JAX reference check (original PyTorch math, no Pallas).
    combined = jnp.concatenate([x, h0], axis=1)
    ref_hidden = combined @ w_i2h.T + b_i2h
    ref_logits = combined @ w_i2o.T + b_i2o
    ref_out = jax.nn.log_softmax(ref_logits, axis=1)

    assert out.shape == (batch, output_size)
    assert new_hidden.shape == (batch, hidden_size)
    assert jnp.allclose(out, ref_out, atol=1e-5, rtol=1e-5)
    assert jnp.allclose(new_hidden, ref_hidden, atol=1e-5, rtol=1e-5)

    print("KERNEL_OK")
</pallas_src>

<mosaic_0001>
module attributes {stable_mosaic.version = 11 : i64} {
  func.func @phage_rnn_kernel(%arg0: memref<2x8xf32, #tpu.memory_space<vmem>>, %arg1: memref<2x32xf32, #tpu.memory_space<vmem>>, %arg2: memref<8x40xf32, #tpu.memory_space<vmem>>, %arg3: memref<32x40xf32, #tpu.memory_space<vmem>>, %arg4: memref<1x40xf32, #tpu.memory_space<vmem>>, %arg5: memref<2x8xf32, #tpu.memory_space<vmem>>, %arg6: memref<2x32xf32, #tpu.memory_space<vmem>>) attributes {dimension_semantics = [], scalar_prefetch = 0 : i64, scratch_operands = 0 : i64, tpu.core_type = #tpu.core_type<tc>} {
    %c0 = arith.constant 0 : index
    %c0_0 = arith.constant 0 : index
    %0 = vector.load %arg0[%c0, %c0_0] : memref<2x8xf32, #tpu.memory_space<vmem>>, vector<2x8xf32>
    %c0_1 = arith.constant 0 : index
    %c0_2 = arith.constant 0 : index
    %1 = vector.load %arg2[%c0_1, %c0_2] : memref<8x40xf32, #tpu.memory_space<vmem>>, vector<8x40xf32>
    %cst = arith.constant dense<0.000000e+00> : vector<2x40xf32>
    %2 = tpu.matmul %0, %1, %cst {dimension_numbers = #tpu.dot_dimension_numbers<[1], [0], [0], [1], [0, 0, 1, 1], [], []>} : vector<2x8xf32>, vector<8x40xf32>, vector<2x40xf32> -> vector<2x40xf32>
    %c0_3 = arith.constant 0 : index
    %c0_4 = arith.constant 0 : index
    %3 = vector.load %arg1[%c0_3, %c0_4] : memref<2x32xf32, #tpu.memory_space<vmem>>, vector<2x32xf32>
    %c0_5 = arith.constant 0 : index
    %c0_6 = arith.constant 0 : index
    %4 = vector.load %arg3[%c0_5, %c0_6] : memref<32x40xf32, #tpu.memory_space<vmem>>, vector<32x40xf32>
    %cst_7 = arith.constant dense<0.000000e+00> : vector<2x40xf32>
    %5 = tpu.matmul %3, %4, %cst_7 {dimension_numbers = #tpu.dot_dimension_numbers<[1], [0], [0], [1], [0, 0, 1, 1], [], []>} : vector<2x32xf32>, vector<32x40xf32>, vector<2x40xf32> -> vector<2x40xf32>
    %6 = arith.addf %2, %5 : vector<2x40xf32>
    %c0_8 = arith.constant 0 : index
    %c0_9 = arith.constant 0 : index
    %7 = vector.load %arg4[%c0_8, %c0_9] : memref<1x40xf32, #tpu.memory_space<vmem>>, vector<1x40xf32>
    %8 = vector.broadcast %7 : vector<1x40xf32> to vector<2x40xf32>
    %9 = arith.addf %6, %8 : vector<2x40xf32>
    %10 = vector.extract_strided_slice %9 {offsets = [0, 0], sizes = [2, 32], strides = [1, 1]} : vector<2x40xf32> to vector<2x32xf32>
    %c0_10 = arith.constant 0 : index
    %c0_11 = arith.constant 0 : index
    %11 = vector.load %arg6[%c0_10, %c0_11] : memref<2x32xf32, #tpu.memory_space<vmem>>, vector<2x32xf32>
    tpu.vector_store %arg6[%c0_10, %c0_11], %10 {strides = array<i32>} : memref<2x32xf32, #tpu.memory_space<vmem>>, vector<2x32xf32>,
    %12 = vector.extract_strided_slice %9 {offsets = [0, 32], sizes = [2, 8], strides = [1, 1]} : vector<2x40xf32> to vector<2x8xf32>
    %cst_12 = arith.constant dense<0xFF800000> : vector<2xf32>
    %13 = vector.multi_reduction <maximumf>, %12, %cst_12 [1] : vector<2x8xf32> to vector<2xf32>
    %14 = vector.shape_cast %13 : vector<2xf32> to vector<2x1xf32>
    %15 = vector.broadcast %14 : vector<2x1xf32> to vector<2x8xf32>
    %16 = arith.subf %12, %15 : vector<2x8xf32>
    %17 = math.exp %16 : vector<2x8xf32>
    %cst_13 = arith.constant dense<0.000000e+00> : vector<2xf32>
    %18 = vector.multi_reduction <add>, %17, %cst_13 [1] : vector<2x8xf32> to vector<2xf32>
    %19 = vector.shape_cast %18 : vector<2xf32> to vector<2x1xf32>
    %20 = math.log %19 : vector<2x1xf32>
    %21 = vector.broadcast %20 : vector<2x1xf32> to vector<2x8xf32>
    %22 = arith.subf %16, %21 : vector<2x8xf32>
    %c0_14 = arith.constant 0 : index
    %c0_15 = arith.constant 0 : index
    %23 = vector.load %arg5[%c0_14, %c0_15] : memref<2x8xf32, #tpu.memory_space<vmem>>, vector<2x8xf32>
    tpu.vector_store %arg5[%c0_14, %c0_15], %22 {strides = array<i32>} : memref<2x8xf32, #tpu.memory_space<vmem>>, vector<2x8xf32>,
    return
  }
}

</mosaic_0001>

<llo_original>
// kernel: tpu_custom_call.1
$region0: #{tpu_custom_call.1}
  #allocation0 [shape = 'u32[]', space=smem, size = 0x4, offset = 0x4, fixed_abs, tag = 'smem constant byte address 0x4 - core index']
  #allocation1 [shape = 'u32[72,128]{1,0:T(1,128)}', space=vmem, size = 0x9000, scoped, tag = 'internal scratch']
  %s0 = inlined_call_operand.hbm [shape: f32[2,8], index: 0, kind: input, shape index: {}]
  %s1 = inlined_call_operand.hbm [shape: f32[2,32], index: 1, kind: input, shape index: {}]
  %s2 = inlined_call_operand.hbm [shape: f32[8,40], index: 2, kind: input, shape index: {}]
  %s3 = inlined_call_operand.hbm [shape: f32[32,40], index: 3, kind: input, shape index: {}]
  %s4 = inlined_call_operand.vmem [shape: f32[1,40], index: 4, kind: input, shape index: {}]
  %s5 = inlined_call_operand.hbm [shape: f32[2,8], index: 5, kind: output, shape index: {0}]
  %s6 = inlined_call_operand.hbm [shape: f32[2,32], index: 6, kind: output, shape index: {1}]
  %7 = xla_tuple %s5, %s6
  %s8 = sld [smem:[#allocation0]]
  $region54: #{tpu_custom_call.1} parent=0
    _
  %s10 = ssub.s32 1, %s8
  %s11 = scalar_select 0, %s10, %s8
  $region1: #{tpu_custom_call.1} parent=0
    #allocation2 [shape = 'u8[1024]{0}', space=vmem, size = 0x400, scoped, tag = 'input window, operand 0, single buffered']
    #allocation3 [shape = 's32[1]{0}', space=sflag, size = 0x4, scoped, tag = 'scoped memory for tpu_custom_call.1']
    #allocation4 [shape = 's32[1]{0}', space=sflag, size = 0x4, scoped, tag = 'scoped memory for tpu_custom_call.1']
    #allocation5 [shape = 'u8[1024]{0}', space=vmem, size = 0x400, scoped, tag = 'input window, operand 1, single buffered']
    #allocation6 [shape = 's32[1]{0}', space=sflag, size = 0x4, scoped, tag = 'scoped memory for tpu_custom_call.1']
    #allocation7 [shape = 'u8[4096]{0}', space=vmem, size = 0x1000, scoped, tag = 'input window, operand 2, single buffered']
    #allocation8 [shape = 'u8[16384]{0}', space=vmem, size = 0x4000, scoped, tag = 'input window, operand 3, single buffered']
    #allocation9 [shape = 's32[1]{0}', space=sflag, size = 0x4, scoped, tag = 'scoped memory for tpu_custom_call.1']
    #allocation10 [shape = 'u8[1024]{0}', space=vmem, size = 0x400, scoped, tag = 'output window, operand 0, single buffered']
    #allocation11 [shape = 'u8[1024]{0}', space=vmem, size = 0x400, scoped, tag = 'output window, operand 1, single buffered']
    #allocation12 [shape = 's32[1]{0}', space=sflag, size = 0x4, scoped, tag = 'scoped memory for tpu_custom_call.1']
    %12 = vsyncpa [#allocation3], 0
    %13 = vsyncpa [#allocation6], 0
    %14 = vsyncpa [#allocation9], 0
    %15 = vsyncpa [#allocation4], 0
    %16 = vsyncpa [#allocation12], 0
    // Predicated region
    $region2: #{tpu_custom_call.1} parent=1 // pred_check
      _
    $region3: #{tpu_custom_call.1} parent=1 // pred_check_branch
      %18 = sbr.rel (0) target = $region5
    $region4: #{tpu_custom_call.1} parent=1 // pred_region
      %20 = vsyncadd [#allocation3], 0
      %s22 = sshll.u32 %s0, 4
      %s23 = int_to_ptr.hbm [resolvable:$true] %s22
      %s24 = sshll.u32 [#allocation2], 4
      %s25 = int_to_ptr.vmem [resolvable:$true] %s24
      %27 = dma.hbm_to_vmem [thread:$0]  %s23, 32, %s25, [#allocation3]
    $region5: #{tpu_custom_call.1} parent=1 // pred_fallthru
      _
    // Predicated region
    $region6: #{tpu_custom_call.1} parent=1 // pred_check
      _
    $region7: #{tpu_custom_call.1} parent=1 // pred_check_branch
      %29 = sbr.rel (0) target = $region9
    $region8: #{tpu_custom_call.1} parent=1 // pred_region
      %31 = vsyncadd [#allocation6], 0
      %s33 = sshll.u32 %s1, 4
      %s34 = int_to_ptr.hbm [resolvable:$true] %s33
      %s35 = sshll.u32 [#allocation5], 4
      %s36 = int_to_ptr.vmem [resolvable:$true] %s35
      %38 = dma.hbm_to_vmem [thread:$0]  %s34, 32, %s36, [#allocation6]
    $region9: #{tpu_custom_call.1} parent=1 // pred_fallthru
      _
    // Predicated region
    $region10: #{tpu_custom_call.1} parent=1 // pred_check
      _
    $region11: #{tpu_custom_call.1} parent=1 // pred_check_branch
      %40 = sbr.rel (0) target = $region13
    $region12: #{tpu_custom_call.1} parent=1 // pred_region
      %42 = vsyncadd [#allocation6], 0
      %s44 = sshll.u32 %s2, 4
      %s45 = int_to_ptr.hbm [resolvable:$true] %s44
      %s46 = sshll.u32 [#allocation7], 4
      %s47 = int_to_ptr.vmem [resolvable:$true] %s46
      %49 = dma.hbm_to_vmem [thread:$0]  %s45, 128, %s47, [#allocation6]
    $region13: #{tpu_custom_call.1} parent=1 // pred_fallthru
      _
    // Predicated region
    $region14: #{tpu_custom_call.1} parent=1 // pred_check
      _
    $region15: #{tpu_custom_call.1} parent=1 // pred_check_branch
      %51 = sbr.rel (0) target = $region17
    $region16: #{tpu_custom_call.1} parent=1 // pred_region
      %53 = vsyncadd [#allocation9], 0
      %s54 = sshll.u32 %s3, 4
      %s55 = int_to_ptr.hbm [resolvable:$true] %s54
      %s56 = sshll.u32 [#allocation8], 4
      %s57 = int_to_ptr.vmem [resolvable:$true] %s56
      %62 = dma.hbm_to_vmem [thread:$0]  %s55, 512, %s57, [#allocation9], 128, 128, 8
    $region17: #{tpu_custom_call.1} parent=1 // pred_fallthru
      _
    // Predicated region
    $region18: #{tpu_custom_call.1} parent=1 // pred_check
      _
    $region19: #{tpu_custom_call.1} parent=1 // pred_check_branch
      %64 = sbr.rel (0) target = $region21
    $region20: #{tpu_custom_call.1} parent=1 // pred_region
      _
    $region21: #{tpu_custom_call.1} parent=1 // pred_fallthru
      _
    // Predicated region
    $region22: #{tpu_custom_call.1} parent=1 // pred_check
      _
    $region23: #{tpu_custom_call.1} parent=1 // pred_check_branch
      %66 = sbr.rel (0) target = $region25
    $region24: #{tpu_custom_call.1} parent=1 // pred_region
      %68 = dma.done [#allocation3], 32
    $region25: #{tpu_custom_call.1} parent=1 // pred_fallthru
      _
    // Predicated region
    $region26: #{tpu_custom_call.1} parent=1 // pred_check
      _
    $region27: #{tpu_custom_call.1} parent=1 // pred_check_branch
      %70 = sbr.rel (0) target = $region29
    $region28: #{tpu_custom_call.1} parent=1 // pred_region
      %72 = dma.done [#allocation6], 32
    $region29: #{tpu_custom_call.1} parent=1 // pred_fallthru
      _
    // Predicated region
    $region30: #{tpu_custom_call.1} parent=1 // pred_check
      _
    $region31: #{tpu_custom_call.1} parent=1 // pred_check_branch
      %74 = sbr.rel (0) target = $region33
    $region32: #{tpu_custom_call.1} parent=1 // pred_region
      %76 = dma.done [#allocation6], 128
    $region33: #{tpu_custom_call.1} parent=1 // pred_fallthru
      _
    // Predicated region
    $region34: #{tpu_custom_call.1} parent=1 // pred_check
      _
    $region35: #{tpu_custom_call.1} parent=1 // pred_check_branch
      %78 = sbr.rel (0) target = $region37
    $region36: #{tpu_custom_call.1} parent=1 // pred_region
      %80 = dma.done [#allocation9], 512
    $region37: #{tpu_custom_call.1} parent=1 // pred_fallthru
      _
    %v81 = vld [vmem:[#allocation2] sm:$0x3]
    %v82 = vld [vmem:[#allocation7] sm:$0xff]
    %v83 = vld [vmem:[#allocation5] sm:$0x3]
    %v84 = vld [vmem:[#allocation8] sm:$0xff]
    %v85 = vld [vmem:[#allocation8 + $0x8] sm:$0xff]
    %v86 = vld [vmem:[#allocation8 + $0x10] sm:$0xff]
    %v87 = vld [vmem:[#allocation8 + $0x18] sm:$0xff]
    %vm88 = vcmask 261120
    %v90 = vsel %vm88, %v83, 0
    %92 = vmatpush.msra.mxu0 0.0
    %93 = vmatpush.msra.mxu0 0.0
    %94 = vmatpush.msra.mxu0 0.0
    %95 = vmatpush.msra.mxu0 0.0
    %96 = vmatpush.msra.mxu0 0.0
    %97 = vmatpush.msra.mxu0 0.0
    %98 = vmatpush.msra.mxu0 0.0
    %99 = vmatpush.msra.mxu0 0.0
    %100 = vmatpush.msra.mxu0 0.0
    %101 = vmatpush.msra.mxu0 0.0
    %102 = vmatpush.msra.mxu0 0.0
    %103 = vmatpush.msra.mxu0 0.0
    %104 = vmatpush.msra.mxu0 %v87
    %105 = vmatpush.msra.mxu0 %v86
    %106 = vmatpush.msra.mxu0 %v85
    %107 = vmatpush.msra.mxu0 %v84
    %108 = vmatmul.f32.gmra.mxu0 %v90
    %v109 = vpop.f32.mrf.mxu0
    %v110 = vadd.f32 0.0, %v109
    %111 = vdwg.mxu0
    %vm112 = vcmask 64512
    %v114 = vsel %vm112, %v81, 0
    %116 = vmatpush.msra.mxu0 0.0
    %117 = vmatpush.msra.mxu0 0.0
    %118 = vmatpush.msra.mxu0 0.0
    %119 = vmatpush.msra.mxu0 0.0
    %120 = vmatpush.msra.mxu0 0.0
    %121 = vmatpush.msra.mxu0 0.0
    %122 = vmatpush.msra.mxu0 0.0
    %123 = vmatpush.msra.mxu0 0.0
    %124 = vmatpush.msra.mxu0 0.0
    %125 = vmatpush.msra.mxu0 0.0
    %126 = vmatpush.msra.mxu0 0.0
    %127 = vmatpush.msra.mxu0 0.0
    %128 = vmatpush.msra.mxu0 0.0
    %129 = vmatpush.msra.mxu0 0.0
    %130 = vmatpush.msra.mxu0 0.0
    %131 = vmatpush.msra.mxu0 %v82
    %132 = vmatmul.f32.gmra.mxu0 %v114
    %v133 = vpop.f32.mrf.mxu0
    %v134 = vadd.f32 %v110, %v133
    %135 = vdwg.mxu0
    %v136 = vld [vmem:[%s4] sm:$0x1]
    %v138 = vperm.slane %v136, 0
    %v140 = vadd.f32 %v134, %v138
    %vm141 = vcmask 254976
    %142 = vst.msk [vmem:[#allocation11] sm:$0x3] %vm141, %v140
    %vm143 = vcmask 320768
    %v144 = vsel %vm143, %v140, -inf
    %145 = vmax.xlane.f32.xlu0 %v144
    %v146 = vpop.xlane.xlu0 %145
    %v147 = vsub.f32 %v140, %v146
    %v148 = vmul.f32 %v147, 1.442695
    %v149 = vpow.pop %v148
    %151 = vrot.lane.b32.xlu0 %v149, 96
    %v152 = vpop.permute.xlu0 %151
    %vm154 = vcmask 58368
    %v155 = vsel %vm154, %v152, 0.0
    %156 = vadd.xlane.f32.xlu0 %v155
    %v157 = vpop.xlane.xlu0 %156
    %v158 = vlog2.pop %v157
    %v159 = vmul.f32 %v158, 0.6931472
    %v160 = vsub.f32 %v147, %v159
    %162 = vrot.lane.b32.xlu0 %v160, 96
    %v163 = vpop.permute.xlu0 %162
    %165 = vst.msk [vmem:[#allocation10] sm:$0x3] %vm154, %v163
    // Predicated region
    $region38: #{tpu_custom_call.1} parent=1 // pred_check
      _
    $region39: #{tpu_custom_call.1} parent=1 // pred_check_branch
      %167 = sbr.rel (0) target = $region41
    $region40: #{tpu_custom_call.1} parent=1 // pred_region
      %169 = vsyncadd [#allocation4], 0
      %s171 = sshll.u32 [#allocation10], 4
      %s172 = int_to_ptr.vmem [resolvable:$true] %s171
      %s173 = sshll.u32 %s5, 4
      %s174 = int_to_ptr.hbm [resolvable:$true] %s173
      %176 = dma.vmem_to_hbm [thread:$0]  %s172, 32, %s174, [#allocation4]
    $region41: #{tpu_custom_call.1} parent=1 // pred_fallthru
      _
    // Predicated region
    $region42: #{tpu_custom_call.1} parent=1 // pred_check
      _
    $region43: #{tpu_custom_call.1} parent=1 // pred_check_branch
      %178 = sbr.rel (0) target = $region45
    $region44: #{tpu_custom_call.1} parent=1 // pred_region
      %180 = vsyncadd [#allocation12], 0
      %s182 = sshll.u32 [#allocation11], 4
      %s183 = int_to_ptr.vmem [resolvable:$true] %s182
      %s184 = sshll.u32 %s6, 4
      %s185 = int_to_ptr.hbm [resolvable:$true] %s184
      %187 = dma.vmem_to_hbm [thread:$0]  %s183, 32, %s185, [#allocation12]
    $region45: #{tpu_custom_call.1} parent=1 // pred_fallthru
      _
    // Predicated region
    $region46: #{tpu_custom_call.1} parent=1 // pred_check
      _
    $region47: #{tpu_custom_call.1} parent=1 // pred_check_branch
      %189 = sbr.rel (0) target = $region49
    $region48: #{tpu_custom_call.1} parent=1 // pred_region
      %191 = dma.done [#allocation4], 32
    $region49: #{tpu_custom_call.1} parent=1 // pred_fallthru
      _
    // Predicated region
    $region50: #{tpu_custom_call.1} parent=1 // pred_check
      _
    $region51: #{tpu_custom_call.1} parent=1 // pred_check_branch
      %193 = sbr.rel (0) target = $region53
    $region52: #{tpu_custom_call.1} parent=1 // pred_region
      %195 = dma.done [#allocation12], 32
    $region53: #{tpu_custom_call.1} parent=1 // pred_fallthru
      _
    %196 = vsyncpa [#allocation3], 1
    %197 = vsyncpa [#allocation6], 1
    %198 = vsyncpa [#allocation9], 1
    %199 = vsyncpa [#allocation4], 1
    %200 = vsyncpa [#allocation12], 1

</llo_original>
